<compile_context>
chip_gen: v6e
topology: v6e:2x2x1
jax: 0.10.0
libtpu: 0.0.40
codegen_flags: <defaults>
</compile_context>

<pallas_src>
import functools

import jax
import jax.numpy as jnp
from jax.experimental import pallas as pl
from jax.experimental.pallas import tpu as pltpu


def _round_up(x, m):
    return ((x + m - 1) // m) * m


# ----------------------------- Pallas kernel ---------------------------------

def _hyper_q_kernel(Ep, ZKp, Dp, Wp, Op, D, O, compute_dtype,
                    x_ref, w_in_ref, b_in_ref, A2_ref, a2_ref, w1r_ref, w2sel_ref,
                    q_ref):
    cd = compute_dtype

    x = x_ref[...].astype(cd)                                    # (TB, M+K)

    # ---- fused block-diagonal input matmul: [ h0_pre(Ep) | base_rep(ZKp) | bias1(Dp) ]
    pre = jnp.dot(x, w_in_ref[...], preferred_element_type=jnp.float32) + b_in_ref[...]
    h0 = jnp.maximum(pre[:, :Ep], 0.0)                           # (TB, Ep); lanes >= E are exactly 0
    base_rep = pre[:, Ep:Ep + ZKp]                               # (TB, ZKp)
    bias1 = pre[:, Ep + ZKp:Ep + ZKp + Dp]                       # (TB, Dp)

    # ---- fused generator matmul (we2 folded in): every segment 128-lane aligned
    # big = [ z_rep(ZKp) | b1(Dp) | s1(Dp) | w2flat(Wp) | s2(Op) | b2(Op) ]
    big = jnp.dot(h0.astype(cd), A2_ref[...],
                  preferred_element_type=jnp.float32) + a2_ref[...]
    o0 = 0
    z_rep = big[:, o0:o0 + ZKp]; o0 += ZKp
    b1 = big[:, o0:o0 + Dp]; o0 += Dp
    s1 = big[:, o0:o0 + Dp]; o0 += Dp
    w2g = big[:, o0:o0 + Wp]; o0 += Wp
    s2 = big[:, o0:o0 + Op]; o0 += Op
    b2 = big[:, o0:o0 + Op]

    # ---- dynamic layer 1: Khatri-Rao product (one VPU multiply) + MXU contraction
    zk = (z_rep * base_rep).astype(cd)                           # (TB, ZKp)
    h_pre = jnp.dot(zk, w1r_ref[...], preferred_element_type=jnp.float32) + bias1
    h = jnp.maximum(h_pre * s1 + b1, 0.0)                        # (TB, Dp); lanes >= D are exactly 0

    # ---- dynamic layer 2: per-row reduce moved onto the MXU (frees XLU/VPU tail)
    if O == 1:
        red = jnp.dot((w2g * h).astype(cd), w2sel_ref[...],
                      preferred_element_type=jnp.float32)        # (TB, Op)
        q = red[:, :O] * s2[:, :O] + b2[:, :O]                   # all slices lane-0 aligned
    else:
        cols = [jnp.sum(w2g[:, o * D:(o + 1) * D] * h[:, :D], axis=-1, keepdims=True)
                for o in range(O)]
        q = jnp.concatenate(cols, axis=1) * s2[:, :O] + b2[:, :O]
    q_ref[...] = q.astype(q_ref.dtype)


# ----------------------------- parameters ------------------------------------

def init_hyper_params(key, meta_dim, base_dim, *, emb_hidden=32, z_dim=32,
                      dyn=32, out_dim=1):
    """Deterministic synthetic parameters for the hypernetwork."""
    ks = jax.random.split(key, 9)

    def lin(k, fan_in, fan_out, scale):
        return (scale * jax.random.normal(k, (fan_in, fan_out), jnp.float32),
                jnp.zeros((1, fan_out), jnp.float32))

    we1, be1 = lin(ks[0], meta_dim, emb_hidden, 0.2)
    we2, be2 = lin(ks[1], emb_hidden, z_dim, 0.2)
    w1w, w1b = lin(ks[2], z_dim, dyn * base_dim, 0.05)
    b1w, b1b = lin(ks[3], z_dim, dyn, 0.05)
    s1w, s1b = lin(ks[4], z_dim, dyn, 0.05)
    s1b = s1b + 1.0   # scale head biased to 1
    w2w, w2b = lin(ks[5], z_dim, out_dim * dyn, 0.008)
    b2w, b2b = lin(ks[6], z_dim, out_dim, 0.008)
    s2w, s2b = lin(ks[7], z_dim, out_dim, 0.008)
    s2b = s2b + 1.0
    return dict(we1=we1, be1=be1, we2=we2, be2=be2,
                w1w=w1w, w1b=w1b, b1w=b1w, b1b=b1b, s1w=s1w, s1b=s1b,
                w2w=w2w, w2b=w2b, b2w=b2w, b2b=b2b, s2w=s2w, s2b=s2b,
                dims=dict(base_dim=base_dim, dyn=dyn, out_dim=out_dim))


def prepare_fused_params(params, *, compute_dtype=jnp.bfloat16):
    """Host-side, batch-independent parameter fusion.  Call once per param update."""
    p = params
    K, D, O = p["dims"]["base_dim"], p["dims"]["dyn"], p["dims"]["out_dim"]
    M, E = p["we1"].shape
    Z = p["we2"].shape[1]
    ZK = Z * K

    Ep = _round_up(E, 128)
    ZKp = _round_up(ZK, 128)
    Dp = _round_up(D, 128)
    Wp = _round_up(O * D, 128)
    Op = _round_up(O, 128)
    f32 = jnp.float32

    # replication selectors
    R = jnp.repeat(jnp.eye(Z, dtype=f32), K, axis=1)             # z_rep[b, zi*K+k] = z[b, zi]
    T = jnp.tile(jnp.eye(K, dtype=f32), (1, Z))                  # base_rep[b, zi*K+k] = base[b, k]

    # --- fused input matmul weights: x = [meta | base]  ->  [h0_pre | base_rep | bias1]
    w_in = jnp.zeros((M + K, Ep + ZKp + Dp), f32)
    w_in = w_in.at[:M, :E].set(p["we1"])
    w_in = w_in.at[M:, Ep:Ep + ZK].set(T)
    w_in = w_in.at[M:, Ep + ZKp:Ep + ZKp + D].set(p["w1b"].reshape(K, D))
    b_in = jnp.zeros((1, Ep + ZKp + Dp), f32).at[:, :E].set(p["be1"])

    # --- fused generator matmul:  z -> [z_rep | b1 | s1 | w2flat | s2 | b2]  (128-aligned segments)
    GW = ZKp + 2 * Dp + Wp + 2 * Op
    A_z = jnp.zeros((Z, GW), f32)
    bgen = jnp.zeros((1, GW), f32)
    off = 0
    A_z = A_z.at[:, off:off + ZK].set(R); off += ZKp
    A_z = A_z.at[:, off:off + D].set(p["b1w"]); bgen = bgen.at[:, off:off + D].set(p["b1b"]); off += Dp
    A_z = A_z.at[:, off:off + D].set(p["s1w"]); bgen = bgen.at[:, off:off + D].set(p["s1b"]); off += Dp
    A_z = A_z.at[:, off:off + O * D].set(p["w2w"]); bgen = bgen.at[:, off:off + O * D].set(p["w2b"]); off += Wp
    A_z = A_z.at[:, off:off + O].set(p["s2w"]); bgen = bgen.at[:, off:off + O].set(p["s2b"]); off += Op
    A_z = A_z.at[:, off:off + O].set(p["b2w"]); bgen = bgen.at[:, off:off + O].set(p["b2b"])

    # fold the z-producing layer (we2, be2) in: big = h0 @ A2 + a2  ==  z @ A_z + bgen
    A2 = jnp.zeros((Ep, GW), f32).at[:E, :].set(p["we2"] @ A_z)
    a2 = p["be2"] @ A_z + bgen

    # Khatri-Rao weights for the dynamic first layer (k-major layout of w1w)
    w1r = jnp.zeros((ZKp, Dp), f32).at[:ZK, :D].set(p["w1w"].reshape(ZK, D))

    # selector for the final MXU reduce: sum_d w2flat[b, o*D+d] * h[b, d]
    w2sel = jnp.zeros((Wp, Op), f32)
    for o in range(O):
        w2sel = w2sel.at[o * D:(o + 1) * D, o].set(1.0)

    cd = compute_dtype
    return dict(
        w_in=w_in.astype(cd), b_in=b_in,
        A2=A2.astype(cd), a2=a2,
        w1r=w1r.astype(cd), w2sel=w2sel.astype(cd),
        dims=dict(M=M, K=K, E=E, Z=Z, D=D, O=O,
                  Ep=Ep, ZKp=ZKp, Dp=Dp, Wp=Wp, Op=Op),
        compute_dtype=cd,
    )


# ----------------------------- wrapper ----------------------------------------

def hyper_q_forward(obs, actions, task_z, fused, *, use_combine=True,
                    value_func=False, batch_tile=1024):
    # --- Hyper_QNetwork.forward glue (concatenation) ---
    if not value_func:
        if use_combine:
            meta_v = jnp.concatenate([obs, task_z], axis=1)
            base_v = actions
        else:
            meta_v = obs
            base_v = jnp.concatenate([actions, task_z], axis=1)
    else:
        meta_v = obs
        base_v = task_z

    d = fused["dims"]
    M, K, D, O = d["M"], d["K"], d["D"], d["O"]
    Ep, ZKp, Dp, Wp, Op = d["Ep"], d["ZKp"], d["Dp"], d["Wp"], d["Op"]
    assert meta_v.shape[1] == M and base_v.shape[1] == K
    cd = fused["compute_dtype"]

    # single batch-streamed operand, cast to the MXU compute dtype on the host
    x = jnp.concatenate([meta_v, base_v], axis=1).astype(cd)     # (B, M+K)
    B = x.shape[0]

    # tile choice: amortize ~0.35us/grid-step overhead, but keep >= 2 grid steps
    # so both TensorCores of a v7x chip get work ("parallel" axis).
    TB = max(8, min(int(batch_tile), _round_up(max(pl.cdiv(B, 2), 1), 8)))
    Bp = pl.cdiv(B, TB) * TB
    # TODO(synk): mask the ragged tail in-kernel instead of padding (low priority).
    x = jnp.pad(x, ((0, Bp - B), (0, 0)))

    plist = [fused["w_in"], fused["b_in"], fused["A2"], fused["a2"],
             fused["w1r"], fused["w2sel"]]
    full = lambda arr: pl.BlockSpec(arr.shape, lambda i: (0, 0))
    in_specs = [pl.BlockSpec((TB, M + K), lambda i: (i, 0))] + [full(p_) for p_ in plist]

    kernel = functools.partial(_hyper_q_kernel, Ep, ZKp, Dp, Wp, Op, D, O, cd)
    q = pl.pallas_call(
        kernel,
        out_shape=jax.ShapeDtypeStruct((Bp, O), jnp.float32),
        grid=(Bp // TB,),
        in_specs=in_specs,
        out_specs=pl.BlockSpec((TB, O), lambda i: (i, 0)),
        compiler_params=pltpu.CompilerParams(dimension_semantics=("parallel",)),
    )(x, *plist)
    return q[:B]


# plain-JAX reference for validation
def hyper_q_reference(obs, actions, task_z, params, *, use_combine=True,
                      value_func=False):
    if not value_func:
        if use_combine:
            meta_v = jnp.concatenate([obs, task_z], axis=1)
            base_v = actions
        else:
            meta_v = obs
            base_v = jnp.concatenate([actions, task_z], axis=1)
    else:
        meta_v = obs
        base_v = task_z
    p = params
    K, D, O = p["dims"]["base_dim"], p["dims"]["dyn"], p["dims"]["out_dim"]
    h0 = jnp.maximum(meta_v @ p["we1"] + p["be1"], 0.0)
    z = h0 @ p["we2"] + p["be2"]
    w1 = (z @ p["w1w"] + p["w1b"]).reshape(-1, K, D)          # k-major layout
    b1 = z @ p["b1w"] + p["b1b"]
    s1 = z @ p["s1w"] + p["s1b"]
    h = jnp.maximum(jnp.einsum("bkd,bk->bd", w1, base_v) * s1 + b1, 0.0)
    w2 = (z @ p["w2w"] + p["w2b"]).reshape(-1, O, D)
    b2 = z @ p["b2w"] + p["b2b"]
    s2 = z @ p["s2w"] + p["s2b"]
    return jnp.einsum("bod,bd->bo", w2, h) * s2 + b2


if __name__ == "__main__":
    # small shapes implied by the module: obs_dim=8, latent_dim=4, action_dim=4
    batch, obs_dim, latent_dim, action_dim = 2, 8, 4, 4
    use_combine = True                       # => meta_v = [obs, task_z], base_v = actions
    meta_dim = obs_dim + latent_dim
    base_dim = action_dim

    key = jax.random.PRNGKey(0)
    k_obs, k_act, k_z, k_par = jax.random.split(key, 4)
    obs = jax.random.normal(k_obs, (batch, obs_dim), jnp.float32)
    actions = jax.random.normal(k_act, (batch, action_dim), jnp.float32)
    task_z = jax.random.normal(k_z, (batch, latent_dim), jnp.float32)

    params = init_hyper_params(k_par, meta_dim, base_dim,
                               emb_hidden=32, z_dim=32, dyn=32, out_dim=1)

    # 1) f32 precision path: tight check against the plain-JAX reference.
    fused32 = prepare_fused_params(params, compute_dtype=jnp.float32)
    q32 = hyper_q_forward(obs, actions, task_z, fused32, use_combine=use_combine)
    q32 = jax.block_until_ready(q32)
    q_ref = hyper_q_reference(obs, actions, task_z, params, use_combine=use_combine)
    assert q32.shape == (batch, 1)
    assert jnp.allclose(q32, q_ref, atol=2e-4, rtol=2e-4), (q32, q_ref)

    # 2) bf16 MXU path at a ragged batch: exercises padding + multi-step grid.
    fusedbf = prepare_fused_params(params, compute_dtype=jnp.bfloat16)
    B2 = 300
    k2 = jax.random.split(key, 3)
    obs2 = jax.random.normal(k2[0], (B2, obs_dim), jnp.float32)
    act2 = jax.random.normal(k2[1], (B2, action_dim), jnp.float32)
    tz2 = jax.random.normal(k2[2], (B2, latent_dim), jnp.float32)
    qbf = hyper_q_forward(obs2, act2, tz2, fusedbf, use_combine=use_combine,
                          batch_tile=1024)
    qbf = jax.block_until_ready(qbf)
    qr2 = hyper_q_reference(obs2, act2, tz2, params, use_combine=use_combine)
    assert qbf.shape == (B2, 1)
    assert jnp.allclose(qbf, qr2, atol=5e-2, rtol=5e-2), \
        float(jnp.max(jnp.abs(qbf - qr2)))

    # TODO(synk): Hyper_Network source is not in the provided module; the standard
    # PEARL hypernetwork head (MetaEmbedding + 2 weight-generator Heads) is implemented.
    print("KERNEL_OK")
</pallas_src>

<mosaic_0001>
module attributes {stable_mosaic.version = 11 : i64} {
  func.func @_hyper_q_kernel(%arg0: i32, %arg1: memref<8x16xf32, #tpu.memory_space<vmem>>, %arg2: memref<16x384xf32, #tpu.memory_space<vmem>>, %arg3: memref<1x384xf32, #tpu.memory_space<vmem>>, %arg4: memref<128x768xf32, #tpu.memory_space<vmem>>, %arg5: memref<1x768xf32, #tpu.memory_space<vmem>>, %arg6: memref<128x128xf32, #tpu.memory_space<vmem>>, %arg7: memref<128x128xf32, #tpu.memory_space<vmem>>, %arg8: memref<8x1xf32, #tpu.memory_space<vmem>>) attributes {dimension_semantics = [#tpu.dimension_semantics<parallel>], iteration_bounds = array<i64: 1>, scalar_prefetch = 0 : i64, scratch_operands = 0 : i64, tpu.core_type = #tpu.core_type<tc>, window_params = [{transform_indices = @transform_0, window_bounds = array<i64: 8, 16>}, {pipeline_mode = #tpu.pipeline_mode<synchronous>, transform_indices = @transform_1, window_bounds = array<i64: 16, 384>}, {pipeline_mode = #tpu.pipeline_mode<synchronous>, transform_indices = @transform_2, window_bounds = array<i64: 1, 384>}, {pipeline_mode = #tpu.pipeline_mode<synchronous>, transform_indices = @transform_3, window_bounds = array<i64: 128, 768>}, {pipeline_mode = #tpu.pipeline_mode<synchronous>, transform_indices = @transform_4, window_bounds = array<i64: 1, 768>}, {pipeline_mode = #tpu.pipeline_mode<synchronous>, transform_indices = @transform_5, window_bounds = array<i64: 128, 128>}, {pipeline_mode = #tpu.pipeline_mode<synchronous>, transform_indices = @transform_6, window_bounds = array<i64: 128, 128>}, {transform_indices = @transform_7, window_bounds = array<i64: 8, 1>}]} {
    %c0 = arith.constant 0 : index
    %c0_0 = arith.constant 0 : index
    %0 = vector.load %arg1[%c0, %c0_0] : memref<8x16xf32, #tpu.memory_space<vmem>>, vector<8x16xf32>
    %c0_1 = arith.constant 0 : index
    %c0_2 = arith.constant 0 : index
    %1 = vector.load %arg2[%c0_1, %c0_2] : memref<16x384xf32, #tpu.memory_space<vmem>>, vector<16x384xf32>
    %cst = arith.constant dense<0.000000e+00> : vector<8x384xf32>
    %2 = tpu.matmul %0, %1, %cst {dimension_numbers = #tpu.dot_dimension_numbers<[1], [0], [0], [1], [0, 0, 1, 1], [], []>} : vector<8x16xf32>, vector<16x384xf32>, vector<8x384xf32> -> vector<8x384xf32>
    %c0_3 = arith.constant 0 : index
    %c0_4 = arith.constant 0 : index
    %3 = vector.load %arg3[%c0_3, %c0_4] : memref<1x384xf32, #tpu.memory_space<vmem>>, vector<1x384xf32>
    %4 = vector.broadcast %3 : vector<1x384xf32> to vector<8x384xf32>
    %5 = arith.addf %2, %4 : vector<8x384xf32>
    %6 = vector.extract_strided_slice %5 {offsets = [0, 0], sizes = [8, 128], strides = [1, 1]} : vector<8x384xf32> to vector<8x128xf32>
    %cst_5 = arith.constant 0.000000e+00 : f32
    %7 = vector.broadcast %cst_5 : f32 to vector<8x128xf32>
    %8 = arith.maximumf %6, %7 : vector<8x128xf32>
    %9 = vector.extract_strided_slice %5 {offsets = [0, 128], sizes = [8, 128], strides = [1, 1]} : vector<8x384xf32> to vector<8x128xf32>
    %10 = vector.extract_strided_slice %5 {offsets = [0, 256], sizes = [8, 128], strides = [1, 1]} : vector<8x384xf32> to vector<8x128xf32>
    %c0_6 = arith.constant 0 : index
    %c0_7 = arith.constant 0 : index
    %11 = vector.load %arg4[%c0_6, %c0_7] : memref<128x768xf32, #tpu.memory_space<vmem>>, vector<128x768xf32>
    %cst_8 = arith.constant dense<0.000000e+00> : vector<8x768xf32>
    %12 = tpu.matmul %8, %11, %cst_8 {dimension_numbers = #tpu.dot_dimension_numbers<[1], [0], [0], [1], [0, 0, 1, 1], [], []>} : vector<8x128xf32>, vector<128x768xf32>, vector<8x768xf32> -> vector<8x768xf32>
    %c0_9 = arith.constant 0 : index
    %c0_10 = arith.constant 0 : index
    %13 = vector.load %arg5[%c0_9, %c0_10] : memref<1x768xf32, #tpu.memory_space<vmem>>, vector<1x768xf32>
    %14 = vector.broadcast %13 : vector<1x768xf32> to vector<8x768xf32>
    %15 = arith.addf %12, %14 : vector<8x768xf32>
    %16 = vector.extract_strided_slice %15 {offsets = [0, 0], sizes = [8, 128], strides = [1, 1]} : vector<8x768xf32> to vector<8x128xf32>
    %17 = vector.extract_strided_slice %15 {offsets = [0, 128], sizes = [8, 128], strides = [1, 1]} : vector<8x768xf32> to vector<8x128xf32>
    %18 = vector.extract_strided_slice %15 {offsets = [0, 256], sizes = [8, 128], strides = [1, 1]} : vector<8x768xf32> to vector<8x128xf32>
    %19 = vector.extract_strided_slice %15 {offsets = [0, 384], sizes = [8, 128], strides = [1, 1]} : vector<8x768xf32> to vector<8x128xf32>
    %20 = vector.extract_strided_slice %15 {offsets = [0, 512], sizes = [8, 128], strides = [1, 1]} : vector<8x768xf32> to vector<8x128xf32>
    %21 = vector.extract_strided_slice %15 {offsets = [0, 640], sizes = [8, 128], strides = [1, 1]} : vector<8x768xf32> to vector<8x128xf32>
    %22 = arith.mulf %16, %9 : vector<8x128xf32>
    %c0_11 = arith.constant 0 : index
    %c0_12 = arith.constant 0 : index
    %23 = vector.load %arg6[%c0_11, %c0_12] : memref<128x128xf32, #tpu.memory_space<vmem>>, vector<128x128xf32>
    %cst_13 = arith.constant dense<0.000000e+00> : vector<8x128xf32>
    %24 = tpu.matmul %22, %23, %cst_13 {dimension_numbers = #tpu.dot_dimension_numbers<[1], [0], [0], [1], [0, 0, 1, 1], [], []>} : vector<8x128xf32>, vector<128x128xf32>, vector<8x128xf32> -> vector<8x128xf32>
    %25 = arith.addf %24, %10 : vector<8x128xf32>
    %26 = arith.mulf %25, %18 : vector<8x128xf32>
    %27 = arith.addf %26, %17 : vector<8x128xf32>
    %cst_14 = arith.constant 0.000000e+00 : f32
    %28 = vector.broadcast %cst_14 : f32 to vector<8x128xf32>
    %29 = arith.maximumf %27, %28 : vector<8x128xf32>
    %30 = arith.mulf %19, %29 : vector<8x128xf32>
    %c0_15 = arith.constant 0 : index
    %c0_16 = arith.constant 0 : index
    %31 = vector.load %arg7[%c0_15, %c0_16] : memref<128x128xf32, #tpu.memory_space<vmem>>, vector<128x128xf32>
    %cst_17 = arith.constant dense<0.000000e+00> : vector<8x128xf32>
    %32 = tpu.matmul %30, %31, %cst_17 {dimension_numbers = #tpu.dot_dimension_numbers<[1], [0], [0], [1], [0, 0, 1, 1], [], []>} : vector<8x128xf32>, vector<128x128xf32>, vector<8x128xf32> -> vector<8x128xf32>
    %33 = vector.extract_strided_slice %32 {offsets = [0, 0], sizes = [8, 1], strides = [1, 1]} : vector<8x128xf32> to vector<8x1xf32>
    %34 = vector.extract_strided_slice %20 {offsets = [0, 0], sizes = [8, 1], strides = [1, 1]} : vector<8x128xf32> to vector<8x1xf32>
    %35 = arith.mulf %33, %34 : vector<8x1xf32>
    %36 = vector.extract_strided_slice %21 {offsets = [0, 0], sizes = [8, 1], strides = [1, 1]} : vector<8x128xf32> to vector<8x1xf32>
    %37 = arith.addf %35, %36 : vector<8x1xf32>
    %c0_18 = arith.constant 0 : index
    %c0_19 = arith.constant 0 : index
    %38 = vector.load %arg8[%c0_18, %c0_19] : memref<8x1xf32, #tpu.memory_space<vmem>>, vector<8x1xf32>
    tpu.vector_store %arg8[%c0_18, %c0_19], %37 {strides = array<i32>} : memref<8x1xf32, #tpu.memory_space<vmem>>, vector<8x1xf32>,
    return
  }
  func.func @transform_0(%arg0: i32) -> (i32, i32) {
    %c0_i32 = arith.constant 0 : i32
    %c0_i32_0 = arith.constant 0 : i32
    return %arg0, %c0_i32 : i32, i32
  }
  func.func @transform_1(%arg0: i32) -> (i32, i32) {
    %c0_i32 = arith.constant 0 : i32
    %c0_i32_0 = arith.constant 0 : i32
    %c0_i32_1 = arith.constant 0 : i32
    return %c0_i32, %c0_i32_0 : i32, i32
  }
  func.func @transform_2(%arg0: i32) -> (i32, i32) {
    %c0_i32 = arith.constant 0 : i32
    %c0_i32_0 = arith.constant 0 : i32
    %c0_i32_1 = arith.constant 0 : i32
    return %c0_i32, %c0_i32_0 : i32, i32
  }
  func.func @transform_3(%arg0: i32) -> (i32, i32) {
    %c0_i32 = arith.constant 0 : i32
    %c0_i32_0 = arith.constant 0 : i32
    %c0_i32_1 = arith.constant 0 : i32
    return %c0_i32, %c0_i32_0 : i32, i32
  }
  func.func @transform_4(%arg0: i32) -> (i32, i32) {
    %c0_i32 = arith.constant 0 : i32
    %c0_i32_0 = arith.constant 0 : i32
    %c0_i32_1 = arith.constant 0 : i32
    return %c0_i32, %c0_i32_0 : i32, i32
  }
  func.func @transform_5(%arg0: i32) -> (i32, i32) {
    %c0_i32 = arith.constant 0 : i32
    %c0_i32_0 = arith.constant 0 : i32
    %c0_i32_1 = arith.constant 0 : i32
    return %c0_i32, %c0_i32_0 : i32, i32
  }
  func.func @transform_6(%arg0: i32) -> (i32, i32) {
    %c0_i32 = arith.constant 0 : i32
    %c0_i32_0 = arith.constant 0 : i32
    %c0_i32_1 = arith.constant 0 : i32
    return %c0_i32, %c0_i32_0 : i32, i32
  }
  func.func @transform_7(%arg0: i32) -> (i32, i32) {
    %c0_i32 = arith.constant 0 : i32
    %c0_i32_0 = arith.constant 0 : i32
    return %arg0, %c0_i32 : i32, i32
  }
}

</mosaic_0001>

<llo_original>
// kernel: tpu_custom_call.1
$region0: #{tpu_custom_call.1}
  #allocation0 [shape = 'u32[]', space=smem, size = 0x4, offset = 0x4, fixed_abs, tag = 'smem constant byte address 0x4 - core index']
  #allocation1 [shape = 'u32[144,128]{1,0:T(1,128)}', space=vmem, size = 0x12000, scoped, tag = 'internal scratch']
  %s0 = inlined_call_operand.hbm [shape: f32[8,16], index: 0, kind: input, shape index: {}]
  %s1 = inlined_call_operand.hbm [shape: f32[16,384], index: 1, kind: input, shape index: {}]
  %s2 = inlined_call_operand.hbm [shape: f32[1,384], index: 2, kind: input, shape index: {}]
  %s3 = inlined_call_operand.hbm [shape: f32[128,768], index: 3, kind: input, shape index: {}]
  %s4 = inlined_call_operand.vmem [shape: f32[1,768], index: 4, kind: input, shape index: {}]
  %s5 = inlined_call_operand.hbm [shape: f32[128,128], index: 5, kind: input, shape index: {}]
  %s6 = inlined_call_operand.hbm [shape: f32[128,128], index: 6, kind: input, shape index: {}]
  %s7 = inlined_call_operand.vmem [shape: f32[8,1], index: 7, kind: output, shape index: {}]
  %s8 = sld [smem:[#allocation0]]
  $region62: #{tpu_custom_call.1} parent=0
    _
  %s10 = ssub.s32 1, %s8
  %s11 = scalar_select 0, %s10, %s8
  $region1: #{tpu_custom_call.1} parent=0
    #allocation2 [shape = 'u8[4096]{0}', space=vmem, size = 0x1000, scoped, tag = 'input window, operand 0, single buffered']
    #allocation3 [shape = 's32[1]{0}', space=sflag, size = 0x4, scoped, tag = 'scoped memory for tpu_custom_call.1']
    #allocation4 [shape = 'u8[24576]{0}', space=vmem, size = 0x6000, scoped, tag = 'input window, operand 1, single buffered']
    #allocation5 [shape = 's32[1]{0}', space=sflag, size = 0x4, scoped, tag = 'scoped memory for tpu_custom_call.1']
    #allocation6 [shape = 'u8[1536]{0}', space=vmem, size = 0x800, scoped, tag = 'input window, operand 2, single buffered']
    #allocation7 [shape = 'u8[393216]{0}', space=vmem, size = 0x60000, scoped, tag = 'input window, operand 3, single buffered']
    #allocation8 [shape = 's32[1]{0}', space=sflag, size = 0x4, scoped, tag = 'scoped memory for tpu_custom_call.1']
    #allocation9 [shape = 'u8[65536]{0}', space=vmem, size = 0x10000, scoped, tag = 'input window, operand 5, single buffered']
    #allocation10 [shape = 'u8[65536]{0}', space=vmem, size = 0x10000, scoped, tag = 'input window, operand 6, single buffered']
    #allocation11 [shape = 's32[1]{0}', space=sflag, size = 0x4, scoped, tag = 'scoped memory for tpu_custom_call.1']
    %12 = vsyncpa [#allocation3], 0
    %13 = vsyncpa [#allocation5], 0
    %14 = vsyncpa [#allocation8], 0
    %15 = vsyncpa [#allocation11], 0
    // Predicated region
    $region2: #{tpu_custom_call.1} parent=1 // pred_check
      _
    $region3: #{tpu_custom_call.1} parent=1 // pred_check_branch
      %17 = sbr.rel (0) target = $region5
    $region4: #{tpu_custom_call.1} parent=1 // pred_region
      %s19 = ssub.s32 128, 128
      %20 = vsyncadd [#allocation3], %s19
      %s22 = sshll.u32 [#allocation2], 4
      %s23 = int_to_ptr.vmem [resolvable:$true] %s22
      %25 = dma.hbm_to_vmem [thread:$0]  %s0, 128, %s23, [#allocation3]
    $region5: #{tpu_custom_call.1} parent=1 // pred_fallthru
      _
    // Predicated region
    $region6: #{tpu_custom_call.1} parent=1 // pred_check
      _
    $region7: #{tpu_custom_call.1} parent=1 // pred_check_branch
      %27 = sbr.rel (0) target = $region9
    $region8: #{tpu_custom_call.1} parent=1 // pred_region
      %s29 = ssub.s32 768, 768
      %30 = vsyncadd [#allocation5], %s29
      %s31 = sshll.u32 [#allocation4], 4
      %s32 = int_to_ptr.vmem [resolvable:$true] %s31
      %37 = dma.hbm_to_vmem [thread:$0]  %s1, 768, %s32, [#allocation5], 384, 384, 24
    $region9: #{tpu_custom_call.1} parent=1 // pred_fallthru
      _
    // Predicated region
    $region10: #{tpu_custom_call.1} parent=1 // pred_check
      _
    $region11: #{tpu_custom_call.1} parent=1 // pred_check_branch
      %39 = sbr.rel (0) target = $region13
    $region12: #{tpu_custom_call.1} parent=1 // pred_region
      %s41 = ssub.s32 48, 48
      %42 = vsyncadd [#allocation5], %s41
      %s44 = sshll.u32 [#allocation6], 4
      %s45 = int_to_ptr.vmem [resolvable:$true] %s44
      %47 = dma.hbm_to_vmem [thread:$0]  %s2, 48, %s45, [#allocation5]
    $region13: #{tpu_custom_call.1} parent=1 // pred_fallthru
      _
    // Predicated region
    $region14: #{tpu_custom_call.1} parent=1 // pred_check
      _
    $region15: #{tpu_custom_call.1} parent=1 // pred_check_branch
      %49 = sbr.rel (0) target = $region17
    $region16: #{tpu_custom_call.1} parent=1 // pred_region
      %s51 = ssub.s32 12288, 12288
      %52 = vsyncadd [#allocation8], %s51
      %s53 = sshll.u32 [#allocation7], 4
      %s54 = int_to_ptr.vmem [resolvable:$true] %s53
      %59 = dma.hbm_to_vmem [thread:$0]  %s3, 12288, %s54, [#allocation8], 768, 768, 48
    $region17: #{tpu_custom_call.1} parent=1 // pred_fallthru
      _
    // Predicated region
    $region18: #{tpu_custom_call.1} parent=1 // pred_check
      _
    $region19: #{tpu_custom_call.1} parent=1 // pred_check_branch
      %61 = sbr.rel (0) target = $region21
    $region20: #{tpu_custom_call.1} parent=1 // pred_region
      _
    $region21: #{tpu_custom_call.1} parent=1 // pred_fallthru
      _
    // Predicated region
    $region22: #{tpu_custom_call.1} parent=1 // pred_check
      _
    $region23: #{tpu_custom_call.1} parent=1 // pred_check_branch
      %63 = sbr.rel (0) target = $region25
    $region24: #{tpu_custom_call.1} parent=1 // pred_region
      %s65 = ssub.s32 2048, 2048
      %66 = vsyncadd [#allocation8], %s65
      %s67 = sshll.u32 [#allocation9], 4
      %s68 = int_to_ptr.vmem [resolvable:$true] %s67
      %73 = dma.hbm_to_vmem [thread:$0]  %s5, 2048, %s68, [#allocation8], 128, 128, 8
    $region25: #{tpu_custom_call.1} parent=1 // pred_fallthru
      _
    // Predicated region
    $region26: #{tpu_custom_call.1} parent=1 // pred_check
      _
    $region27: #{tpu_custom_call.1} parent=1 // pred_check_branch
      %75 = sbr.rel (0) target = $region29
    $region28: #{tpu_custom_call.1} parent=1 // pred_region
      %s77 = ssub.s32 2048, 2048
      %78 = vsyncadd [#allocation11], %s77
      %s79 = sshll.u32 [#allocation10], 4
      %s80 = int_to_ptr.vmem [resolvable:$true] %s79
      %85 = dma.hbm_to_vmem [thread:$0]  %s6, 2048, %s80, [#allocation11], 128, 128, 8
    $region29: #{tpu_custom_call.1} parent=1 // pred_fallthru
      _
    // Predicated region
    $region30: #{tpu_custom_call.1} parent=1 // pred_check
      _
    $region31: #{tpu_custom_call.1} parent=1 // pred_check_branch
      %87 = sbr.rel (0) target = $region33
    $region32: #{tpu_custom_call.1} parent=1 // pred_region
      %88 = dma.done [#allocation3], 128
    $region33: #{tpu_custom_call.1} parent=1 // pred_fallthru
      _
    // Predicated region
    $region34: #{tpu_custom_call.1} parent=1 // pred_check
      _
    $region35: #{tpu_custom_call.1} parent=1 // pred_check_branch
      %90 = sbr.rel (0) target = $region37
    $region36: #{tpu_custom_call.1} parent=1 // pred_region
      %91 = dma.done [#allocation5], 768
    $region37: #{tpu_custom_call.1} parent=1 // pred_fallthru
      _
    // Predicated region
    $region38: #{tpu_custom_call.1} parent=1 // pred_check
      _
    $region39: #{tpu_custom_call.1} parent=1 // pred_check_branch
      %93 = sbr.rel (0) target = $region41
    $region40: #{tpu_custom_call.1} parent=1 // pred_region
      %94 = dma.done [#allocation5], 48
    $region41: #{tpu_custom_call.1} parent=1 // pred_fallthru
      _
    // Predicated region
    $region42: #{tpu_custom_call.1} parent=1 // pred_check
      _
    $region43: #{tpu_custom_call.1} parent=1 // pred_check_branch
      %96 = sbr.rel (0) target = $region45
    $region44: #{tpu_custom_call.1} parent=1 // pred_region
      %97 = dma.done [#allocation8], 12288
    $region45: #{tpu_custom_call.1} parent=1 // pred_fallthru
      _
    // Predicated region
    $region46: #{tpu_custom_call.1} parent=1 // pred_check
      _
    $region47: #{tpu_custom_call.1} parent=1 // pred_check_branch
      %99 = sbr.rel (0) target = $region49
    $region48: #{tpu_custom_call.1} parent=1 // pred_region
      %100 = dma.done [#allocation8], 2048
    $region49: #{tpu_custom_call.1} parent=1 // pred_fallthru
      _
    // Predicated region
    $region50: #{tpu_custom_call.1} parent=1 // pred_check
      _
    $region51: #{tpu_custom_call.1} parent=1 // pred_check_branch
      %102 = sbr.rel (0) target = $region53
    $region52: #{tpu_custom_call.1} parent=1 // pred_region
      %103 = dma.done [#allocation11], 2048
    $region53: #{tpu_custom_call.1} parent=1 // pred_fallthru
      _
    %v104 = vld [vmem:[#allocation2] sm:$0xff]
    %v105 = vld [vmem:[#allocation4] sm:$0xff]
    %v106 = vld [vmem:[#allocation4 + $0x8] sm:$0xff]
    %v107 = vld [vmem:[#allocation4 + $0x10] sm:$0xff]
    %v108 = vld [vmem:[#allocation4 + $0x18] sm:$0xff]
    %v109 = vld [vmem:[#allocation4 + $0x20] sm:$0xff]
    %v110 = vld [vmem:[#allocation4 + $0x28] sm:$0xff]
    %v111 = vld [vmem:[#allocation6] sm:$0x7]
    %v113 = vlaneseq
    %v114 = vshrl.u32 %v113, 7
    %v115 = vsub.s32 0, %v114
    %v116 = vrot.slane %v111, %v115
    %v117 = vlaneseq
    %v118 = vshrl.u32 %v117, 7
    %v119 = vsub.s32 1, %v118
    %v120 = vrot.slane %v111, %v119
    %v121 = vlaneseq
    %v122 = vshrl.u32 %v121, 7
    %v123 = vsub.s32 2, %v122
    %v124 = vrot.slane %v111, %v123
    %vm128 = vcmask 130048
    %v130 = vsel %vm128, %v104, 0
    %132 = vmatprep.subr.mxu0 0.0
    %133 = vmatpush1.msra.mxu0 0.0
    %134 = vmatprep.subr.mxu0 0.0
    %135 = vmatpush1.msra.mxu0 0.0
    %136 = vmatprep.subr.mxu0 0.0
    %137 = vmatpush1.msra.mxu0 0.0
    %138 = vmatprep.subr.mxu0 0.0
    %139 = vmatpush1.msra.mxu0 0.0
    %140 = vmatprep.subr.mxu0 0.0
    %141 = vmatpush1.msra.mxu0 0.0
    %142 = vmatprep.subr.mxu0 0.0
    %143 = vmatpush1.msra.mxu0 0.0
    %144 = vmatprep.subr.mxu0 0.0
    %145 = vmatpush1.msra.mxu0 0.0
    %146 = vmatprep.subr.mxu0 0.0
    %147 = vmatpush1.msra.mxu0 0.0
    %148 = vmatprep.subr.mxu0 0.0
    %149 = vmatpush1.msra.mxu0 0.0
    %150 = vmatprep.subr.mxu0 0.0
    %151 = vmatpush1.msra.mxu0 0.0
    %152 = vmatprep.subr.mxu0 0.0
    %153 = vmatpush1.msra.mxu0 0.0
    %154 = vmatprep.subr.mxu0 0.0
    %155 = vmatpush1.msra.mxu0 0.0
    %156 = vmatprep.subr.mxu0 0.0
    %157 = vmatpush1.msra.mxu0 0.0
    %158 = vmatprep.subr.mxu0 0.0
    %159 = vmatpush1.msra.mxu0 0.0
    %160 = vmatprep.subr.mxu0 %v109
    %161 = vmatpush1.msra.mxu0 %v108
    %162 = vmatprep.subr.mxu0 %v106
    %163 = vmatpush1.msra.mxu0 %v105
    %164 = vmatprep.subr.mxu0 0.0
    %165 = vmatpush2.msra.mxu0 0.0
    %166 = vmatprep.subr.mxu0 0.0
    %167 = vmatpush2.msra.mxu0 0.0
    %168 = vmatprep.subr.mxu0 0.0
    %169 = vmatpush2.msra.mxu0 0.0
    %170 = vmatprep.subr.mxu0 0.0
    %171 = vmatpush2.msra.mxu0 0.0
    %172 = vmatprep.subr.mxu0 0.0
    %173 = vmatpush2.msra.mxu0 0.0
    %174 = vmatprep.subr.mxu0 0.0
    %175 = vmatpush2.msra.mxu0 0.0
    %176 = vmatprep.subr.mxu0 0.0
    %177 = vmatpush2.msra.mxu0 0.0
    %178 = vmatprep.subr.mxu0 0.0
    %179 = vmatpush2.msra.mxu0 0.0
    %180 = vmatprep.subr.mxu0 0.0
    %181 = vmatpush2.msra.mxu0 0.0
    %182 = vmatprep.subr.mxu0 0.0
    %183 = vmatpush2.msra.mxu0 0.0
    %184 = vmatprep.subr.mxu0 0.0
    %185 = vmatpush2.msra.mxu0 0.0
    %186 = vmatprep.subr.mxu0 0.0
    %187 = vmatpush2.msra.mxu0 0.0
    %188 = vmatprep.subr.mxu0 0.0
    %189 = vmatpush2.msra.mxu0 0.0
    %190 = vmatprep.subr.mxu0 0.0
    %191 = vmatpush2.msra.mxu0 0.0
    %192 = vmatprep.subr.mxu0 0.0
    %193 = vmatpush2.msra.mxu0 0.0
    %194 = vmatprep.subr.mxu0 0.0
    %195 = vmatpush2.msra.mxu0 0.0
    %196 = vmatprep.mubr.f32.mxu0 0.0
    %197 = vmatmul.mubr.f32.gmra.mxu0 %v130
    %v198 = vpop.f32.mrf.mxu0
    %v199 = vadd.f32 %v116, %v198
    %v200 = vpop.f32.mrf.mxu0
    %v201 = vadd.f32 %v120, %v200
    %202 = vdwg.mxu0
    %203 = vmatprep.subr.mxu0 0.0
    %204 = vmatpush1.msra.mxu0 0.0
    %205 = vmatprep.subr.mxu0 0.0
    %206 = vmatpush1.msra.mxu0 0.0
    %207 = vmatprep.subr.mxu0 0.0
    %208 = vmatpush1.msra.mxu0 0.0
    %209 = vmatprep.subr.mxu0 0.0
    %210 = vmatpush1.msra.mxu0 0.0
    %211 = vmatprep.subr.mxu0 0.0
    %212 = vmatpush1.msra.mxu0 0.0
    %213 = vmatprep.subr.mxu0 0.0
    %214 = vmatpush1.msra.mxu0 0.0
    %215 = vmatprep.subr.mxu0 0.0
    %216 = vmatpush1.msra.mxu0 0.0
    %217 = vmatprep.subr.mxu0 0.0
    %218 = vmatpush1.msra.mxu0 0.0
    %219 = vmatprep.subr.mxu0 0.0
    %220 = vmatpush1.msra.mxu0 0.0
    %221 = vmatprep.subr.mxu0 0.0
    %222 = vmatpush1.msra.mxu0 0.0
    %223 = vmatprep.subr.mxu0 0.0
    %224 = vmatpush1.msra.mxu0 0.0
    %225 = vmatprep.subr.mxu0 0.0
    %226 = vmatpush1.msra.mxu0 0.0
    %227 = vmatprep.subr.mxu0 0.0
    %228 = vmatpush1.msra.mxu0 0.0
    %229 = vmatprep.subr.mxu0 0.0
    %230 = vmatpush1.msra.mxu0 0.0
    %231 = vmatprep.subr.mxu0 0.0
    %232 = vmatpush1.msra.mxu0 %v110
    %233 = vmatprep.subr.mxu0 0.0
    %234 = vmatpush1.msra.mxu0 %v107
    %235 = vmatprep.subr.mxu0 0.0
    %236 = vmatpush2.msra.mxu0 0.0
    %237 = vmatprep.subr.mxu0 0.0
    %238 = vmatpush2.msra.mxu0 0.0
    %239 = vmatprep.subr.mxu0 0.0
    %240 = vmatpush2.msra.mxu0 0.0
    %241 = vmatprep.subr.mxu0 0.0
    %242 = vmatpush2.msra.mxu0 0.0
    %243 = vmatprep.subr.mxu0 0.0
    %244 = vmatpush2.msra.mxu0 0.0
    %245 = vmatprep.subr.mxu0 0.0
    %246 = vmatpush2.msra.mxu0 0.0
    %247 = vmatprep.subr.mxu0 0.0
    %248 = vmatpush2.msra.mxu0 0.0
    %249 = vmatprep.subr.mxu0 0.0
    %250 = vmatpush2.msra.mxu0 0.0
    %251 = vmatprep.subr.mxu0 0.0
    %252 = vmatpush2.msra.mxu0 0.0
    %253 = vmatprep.subr.mxu0 0.0
    %254 = vmatpush2.msra.mxu0 0.0
    %255 = vmatprep.subr.mxu0 0.0
    %256 = vmatpush2.msra.mxu0 0.0
    %257 = vmatprep.subr.mxu0 0.0
    %258 = vmatpush2.msra.mxu0 0.0
    %259 = vmatprep.subr.mxu0 0.0
    %260 = vmatpush2.msra.mxu0 0.0
    %261 = vmatprep.subr.mxu0 0.0
    %262 = vmatpush2.msra.mxu0 0.0
    %263 = vmatprep.subr.mxu0 0.0
    %264 = vmatpush2.msra.mxu0 0.0
    %265 = vmatprep.subr.mxu0 0.0
    %266 = vmatpush2.msra.mxu0 0.0
    %267 = vmatprep.mubr.f32.mxu0 0.0
    %268 = vmatmul.mubr.f32.gmra.mxu0 %v130
    %v269 = vpop.f32.mrf.mxu0
    %v270 = vadd.f32 %v124, %v269
    %v271 = vpop.f32.mrf.mxu0
    %272 = vdwg.mxu0
    %v273 = vmax.f32 %v199, 0.0
    %v274 = vld [vmem:[#allocation7] sm:$0xff]
    %v275 = vld [vmem:[#allocation7 + $0x8] sm:$0xff]
    %v276 = vld [vmem:[#allocation7 + $0x10] sm:$0xff]
    %v277 = vld [vmem:[#allocation7 + $0x18] sm:$0xff]
    %v278 = vld [vmem:[#allocation7 + $0x20] sm:$0xff]
    %v279 = vld [vmem:[#allocation7 + $0x28] sm:$0xff]
    %v280 = vld [vmem:[#allocation7 + $0x30] sm:$0xff]
    %v281 = vld [vmem:[#allocation7 + $0x38] sm:$0xff]
    %v282 = vld [vmem:[#allocation7 + $0x40] sm:$0xff]
    %v283 = vld [vmem:[#allocation7 + $0x48] sm:$0xff]
    %v284 = vld [vmem:[#allocation7 + $0x50] sm:$0xff]
    %v285 = vld [vmem:[#allocation7 + $0x58] sm:$0xff]
    %v286 = vld [vmem:[#allocation7 + $0x60] sm:$0xff]
    %v287 = vld [vmem:[#allocation7 + $0x68] sm:$0xff]
    %v288 = vld [vmem:[#allocation7 + $0x70] sm:$0xff]
    %v289 = vld [vmem:[#allocation7 + $0x78] sm:$0xff]
    %v290 = vld [vmem:[#allocation7 + $0x80] sm:$0xff]
    %v291 = vld [vmem:[#allocation7 + $0x88] sm:$0xff]
    %v292 = vld [vmem:[#allocation7 + $0x90] sm:$0xff]
    %v293 = vld [vmem:[#allocation7 + $0x98] sm:$0xff]
    %v294 = vld [vmem:[#allocation7 + $0xa0] sm:$0xff]
    %v295 = vld [vmem:[#allocation7 + $0xa8] sm:$0xff]
    %v296 = vld [vmem:[#allocation7 + $0xb0] sm:$0xff]
    %v297 = vld [vmem:[#allocation7 + $0xb8] sm:$0xff]
    %v298 = vld [vmem:[#allocation7 + $0xc0] sm:$0xff]
    %v299 = vld [vmem:[#allocation7 + $0xc8] sm:$0xff]
    %v300 = vld [vmem:[#allocation7 + $0xd0] sm:$0xff]
    %v301 = vld [vmem:[#allocation7 + $0xd8] sm:$0xff]
    %v302 = vld [vmem:[#allocation7 + $0xe0] sm:$0xff]
    %v303 = vld [vmem:[#allocation7 + $0xe8] sm:$0xff]
    %v304 = vld [vmem:[#allocation7 + $0xf0] sm:$0xff]
    %v305 = vld [vmem:[#allocation7 + $0xf8] sm:$0xff]
    %v306 = vld [vmem:[#allocation7 + $0x100] sm:$0xff]
    %v307 = vld [vmem:[#allocation7 + $0x108] sm:$0xff]
    %v308 = vld [vmem:[#allocation7 + $0x110] sm:$0xff]
    %v309 = vld [vmem:[#allocation7 + $0x118] sm:$0xff]
    %v310 = vld [vmem:[#allocation7 + $0x120] sm:$0xff]
    %v311 = vld [vmem:[#allocation7 + $0x128] sm:$0xff]
    %v312 = vld [vmem:[#allocation7 + $0x130] sm:$0xff]
    %v313 = vld [vmem:[#allocation7 + $0x138] sm:$0xff]
    %v314 = vld [vmem:[#allocation7 + $0x140] sm:$0xff]
    %v315 = vld [vmem:[#allocation7 + $0x148] sm:$0xff]
    %v316 = vld [vmem:[#allocation7 + $0x150] sm:$0xff]
    %v317 = vld [vmem:[#allocation7 + $0x158] sm:$0xff]
    %v318 = vld [vmem:[#allocation7 + $0x160] sm:$0xff]
    %v319 = vld [vmem:[#allocation7 + $0x168] sm:$0xff]
    %v320 = vld [vmem:[#allocation7 + $0x170] sm:$0xff]
    %v321 = vld [vmem:[#allocation7 + $0x178] sm:$0xff]
    %v322 = vld [vmem:[#allocation7 + $0x180] sm:$0xff]
    %v323 = vld [vmem:[#allocation7 + $0x188] sm:$0xff]
    %v324 = vld [vmem:[#allocation7 + $0x190] sm:$0xff]
    %v325 = vld [vmem:[#allocation7 + $0x198] sm:$0xff]
    %v326 = vld [vmem:[#allocation7 + $0x1a0] sm:$0xff]
    %v327 = vld [vmem:[#allocation7 + $0x1a8] sm:$0xff]
    %v328 = vld [vmem:[#allocation7 + $0x1b0] sm:$0xff]
    %v329 = vld [vmem:[#allocation7 + $0x1b8] sm:$0xff]
    %v330 = vld [vmem:[#allocation7 + $0x1c0] sm:$0xff]
    %v331 = vld [vmem:[#allocation7 + $0x1c8] sm:$0xff]
    %v332 = vld [vmem:[#allocation7 + $0x1d0] sm:$0xff]
    %v333 = vld [vmem:[#allocation7 + $0x1d8] sm:$0xff]
    %v334 = vld [vmem:[#allocation7 + $0x1e0] sm:$0xff]
    %v335 = vld [vmem:[#allocation7 + $0x1e8] sm:$0xff]
    %v336 = vld [vmem:[#allocation7 + $0x1f0] sm:$0xff]
    %v337 = vld [vmem:[#allocation7 + $0x1f8] sm:$0xff]
    %v338 = vld [vmem:[#allocation7 + $0x200] sm:$0xff]
    %v339 = vld [vmem:[#allocation7 + $0x208] sm:$0xff]
    %v340 = vld [vmem:[#allocation7 + $0x210] sm:$0xff]
    %v341 = vld [vmem:[#allocation7 + $0x218] sm:$0xff]
    %v342 = vld [vmem:[#allocation7 + $0x220] sm:$0xff]
    %v343 = vld [vmem:[#allocation7 + $0x228] sm:$0xff]
    %v344 = vld [vmem:[#allocation7 + $0x230] sm:$0xff]
    %v345 = vld [vmem:[#allocation7 + $0x238] sm:$0xff]
    %v346 = vld [vmem:[#allocation7 + $0x240] sm:$0xff]
    %v347 = vld [vmem:[#allocation7 + $0x248] sm:$0xff]
    %v348 = vld [vmem:[#allocation7 + $0x250] sm:$0xff]
    %v349 = vld [vmem:[#allocation7 + $0x258] sm:$0xff]
    %v350 = vld [vmem:[#allocation7 + $0x260] sm:$0xff]
    %v351 = vld [vmem:[#allocation7 + $0x268] sm:$0xff]
    %v352 = vld [vmem:[#allocation7 + $0x270] sm:$0xff]
    %v353 = vld [vmem:[#allocation7 + $0x278] sm:$0xff]
    %v354 = vld [vmem:[#allocation7 + $0x280] sm:$0xff]
    %v355 = vld [vmem:[#allocation7 + $0x288] sm:$0xff]
    %v356 = vld [vmem:[#allocation7 + $0x290] sm:$0xff]
    %v357 = vld [vmem:[#allocation7 + $0x298] sm:$0xff]
    %v358 = vld [vmem:[#allocation7 + $0x2a0] sm:$0xff]
    %v359 = vld [vmem:[#allocation7 + $0x2a8] sm:$0xff]
    %v360 = vld [vmem:[#allocation7 + $0x2b0] sm:$0xff]
    %v361 = vld [vmem:[#allocation7 + $0x2b8] sm:$0xff]
    %v362 = vld [vmem:[#allocation7 + $0x2c0] sm:$0xff]
    %v363 = vld [vmem:[#allocation7 + $0x2c8] sm:$0xff]
    %v364 = vld [vmem:[#allocation7 + $0x2d0] sm:$0xff]
    %v365 = vld [vmem:[#allocation7 + $0x2d8] sm:$0xff]
    %v366 = vld [vmem:[#allocation7 + $0x2e0] sm:$0xff]
    %v367 = vld [vmem:[#allocation7 + $0x2e8] sm:$0xff]
    %v368 = vld [vmem:[#allocation7 + $0x2f0] sm:$0xff]
    %v369 = vld [vmem:[#allocation7 + $0x2f8] sm:$0xff]
    %v370 = vld [vmem:[%s4] sm:$0x3f]
    %v372 = vlaneseq
    %v373 = vshrl.u32 %v372, 7
    %v374 = vsub.s32 0, %v373
    %v375 = vrot.slane %v370, %v374
    %v376 = vlaneseq
    %v377 = vshrl.u32 %v376, 7
    %v378 = vsub.s32 1, %v377
    %v379 = vrot.slane %v370, %v378
    %v380 = vlaneseq
    %v381 = vshrl.u32 %v380, 7
    %v382 = vsub.s32 2, %v381
    %v383 = vrot.slane %v370, %v382
    %v384 = vlaneseq
    %v385 = vshrl.u32 %v384, 7
    %v386 = vsub.s32 3, %v385
    %v387 = vrot.slane %v370, %v386
    %v388 = vlaneseq
    %v389 = vshrl.u32 %v388, 7
    %v390 = vsub.s32 4, %v389
    %v391 = vrot.slane %v370, %v390
    %v392 = vlaneseq
    %v393 = vshrl.u32 %v392, 7
    %v394 = vsub.s32 5, %v393
    %v395 = vrot.slane %v370, %v394
    %402 = vmatprep.subr.mxu0 %v365
    %403 = vmatpush1.msra.mxu0 %v364
    %404 = vmatprep.subr.mxu0 %v359
    %405 = vmatpush1.msra.mxu0 %v358
    %406 = vmatprep.subr.mxu0 %v353
    %407 = vmatpush1.msra.mxu0 %v352
    %408 = vmatprep.subr.mxu0 %v347
    %409 = vmatpush1.msra.mxu0 %v346
    %410 = vmatprep.subr.mxu0 %v341
    %411 = vmatpush1.msra.mxu0 %v340
    %412 = vmatprep.subr.mxu0 %v335
    %413 = vmatpush1.msra.mxu0 %v334
    %414 = vmatprep.subr.mxu0 %v329
    %415 = vmatpush1.msra.mxu0 %v328
    %416 = vmatprep.subr.mxu0 %v323
    %417 = vmatpush1.msra.mxu0 %v322
    %418 = vmatprep.subr.mxu0 %v317
    %419 = vmatpush1.msra.mxu0 %v316
    %420 = vmatprep.subr.mxu0 %v311
    %421 = vmatpush1.msra.mxu0 %v310
    %422 = vmatprep.subr.mxu0 %v305
    %423 = vmatpush1.msra.mxu0 %v304
    %424 = vmatprep.subr.mxu0 %v299
    %425 = vmatpush1.msra.mxu0 %v298
    %426 = vmatprep.subr.mxu0 %v293
    %427 = vmatpush1.msra.mxu0 %v292
    %428 = vmatprep.subr.mxu0 %v287
    %429 = vmatpush1.msra.mxu0 %v286
    %430 = vmatprep.subr.mxu0 %v281
    %431 = vmatpush1.msra.mxu0 %v280
    %432 = vmatprep.subr.mxu0 %v275
    %433 = vmatpush1.msra.mxu0 %v274
    %434 = vmatprep.subr.mxu0 0.0
    %435 = vmatpush2.msra.mxu0 0.0
    %436 = vmatprep.subr.mxu0 0.0
    %437 = vmatpush2.msra.mxu0 0.0
    %438 = vmatprep.subr.mxu0 0.0
    %439 = vmatpush2.msra.mxu0 0.0
    %440 = vmatprep.subr.mxu0 0.0
    %441 = vmatpush2.msra.mxu0 0.0
    %442 = vmatprep.subr.mxu0 0.0
    %443 = vmatpush2.msra.mxu0 0.0
    %444 = vmatprep.subr.mxu0 0.0
    %445 = vmatpush2.msra.mxu0 0.0
    %446 = vmatprep.subr.mxu0 0.0
    %447 = vmatpush2.msra.mxu0 0.0
    %448 = vmatprep.subr.mxu0 0.0
    %449 = vmatpush2.msra.mxu0 0.0
    %450 = vmatprep.subr.mxu0 0.0
    %451 = vmatpush2.msra.mxu0 0.0
    %452 = vmatprep.subr.mxu0 0.0
    %453 = vmatpush2.msra.mxu0 0.0
    %454 = vmatprep.subr.mxu0 0.0
    %455 = vmatpush2.msra.mxu0 0.0
    %456 = vmatprep.subr.mxu0 0.0
    %457 = vmatpush2.msra.mxu0 0.0
    %458 = vmatprep.subr.mxu0 0.0
    %459 = vmatpush2.msra.mxu0 0.0
    %460 = vmatprep.subr.mxu0 0.0
    %461 = vmatpush2.msra.mxu0 0.0
    %462 = vmatprep.subr.mxu0 0.0
    %463 = vmatpush2.msra.mxu0 0.0
    %464 = vmatprep.subr.mxu0 0.0
    %465 = vmatpush2.msra.mxu0 0.0
    %466 = vmatprep.mubr.f32.mxu0 0.0
    %467 = vmatmul.mubr.f32.gmra.mxu0 %v273
    %v468 = vpop.f32.mrf.mxu0
    %v469 = vadd.f32 %v375, %v468
    %v470 = vpop.f32.mrf.mxu0
    %v471 = vadd.f32 %v379, %v470
    %472 = vdwg.mxu0
    %473 = vmatprep.subr.mxu0 %v367
    %474 = vmatpush1.msra.mxu0 %v366
    %475 = vmatprep.subr.mxu0 %v361
    %476 = vmatpush1.msra.mxu0 %v360
    %477 = vmatprep.subr.mxu0 %v355
    %478 = vmatpush1.msra.mxu0 %v354
    %479 = vmatprep.subr.mxu0 %v349
    %480 = vmatpush1.msra.mxu0 %v348
    %481 = vmatprep.subr.mxu0 %v343
    %482 = vmatpush1.msra.mxu0 %v342
    %483 = vmatprep.subr.mxu0 %v337
    %484 = vmatpush1.msra.mxu0 %v336
    %485 = vmatprep.subr.mxu0 %v331
    %486 = vmatpush1.msra.mxu0 %v330
    %487 = vmatprep.subr.mxu0 %v325
    %488 = vmatpush1.msra.mxu0 %v324
    %489 = vmatprep.subr.mxu0 %v319
    %490 = vmatpush1.msra.mxu0 %v318
    %491 = vmatprep.subr.mxu0 %v313
    %492 = vmatpush1.msra.mxu0 %v312
    %493 = vmatprep.subr.mxu0 %v307
    %494 = vmatpush1.msra.mxu0 %v306
    %495 = vmatprep.subr.mxu0 %v301
    %496 = vmatpush1.msra.mxu0 %v300
    %497 = vmatprep.subr.mxu0 %v295
    %498 = vmatpush1.msra.mxu0 %v294
    %499 = vmatprep.subr.mxu0 %v289
    %500 = vmatpush1.msra.mxu0 %v288
    %501 = vmatprep.subr.mxu0 %v283
    %502 = vmatpush1.msra.mxu0 %v282
    %503 = vmatprep.subr.mxu0 %v277
    %504 = vmatpush1.msra.mxu0 %v276
    %505 = vmatprep.subr.mxu0 0.0
    %506 = vmatpush2.msra.mxu0 0.0
    %507 = vmatprep.subr.mxu0 0.0
    %508 = vmatpush2.msra.mxu0 0.0
    %509 = vmatprep.subr.mxu0 0.0
    %510 = vmatpush2.msra.mxu0 0.0
    %511 = vmatprep.subr.mxu0 0.0
    %512 = vmatpush2.msra.mxu0 0.0
    %513 = vmatprep.subr.mxu0 0.0
    %514 = vmatpush2.msra.mxu0 0.0
    %515 = vmatprep.subr.mxu0 0.0
    %516 = vmatpush2.msra.mxu0 0.0
    %517 = vmatprep.subr.mxu0 0.0
    %518 = vmatpush2.msra.mxu0 0.0
    %519 = vmatprep.subr.mxu0 0.0
    %520 = vmatpush2.msra.mxu0 0.0
    %521 = vmatprep.subr.mxu0 0.0
    %522 = vmatpush2.msra.mxu0 0.0
    %523 = vmatprep.subr.mxu0 0.0
    %524 = vmatpush2.msra.mxu0 0.0
    %525 = vmatprep.subr.mxu0 0.0
    %526 = vmatpush2.msra.mxu0 0.0
    %527 = vmatprep.subr.mxu0 0.0
    %528 = vmatpush2.msra.mxu0 0.0
    %529 = vmatprep.subr.mxu0 0.0
    %530 = vmatpush2.msra.mxu0 0.0
    %531 = vmatprep.subr.mxu0 0.0
    %532 = vmatpush2.msra.mxu0 0.0
    %533 = vmatprep.subr.mxu0 0.0
    %534 = vmatpush2.msra.mxu0 0.0
    %535 = vmatprep.subr.mxu0 0.0
    %536 = vmatpush2.msra.mxu0 0.0
    %537 = vmatprep.mubr.f32.mxu0 0.0
    %538 = vmatmul.mubr.f32.gmra.mxu0 %v273
    %v539 = vpop.f32.mrf.mxu0
    %v540 = vadd.f32 %v383, %v539
    %v541 = vpop.f32.mrf.mxu0
    %v542 = vadd.f32 %v387, %v541
    %543 = vdwg.mxu0
    %544 = vmatprep.subr.mxu0 %v369
    %545 = vmatpush1.msra.mxu0 %v368
    %546 = vmatprep.subr.mxu0 %v363
    %547 = vmatpush1.msra.mxu0 %v362
    %548 = vmatprep.subr.mxu0 %v357
    %549 = vmatpush1.msra.mxu0 %v356
    %550 = vmatprep.subr.mxu0 %v351
    %551 = vmatpush1.msra.mxu0 %v350
    %552 = vmatprep.subr.mxu0 %v345
    %553 = vmatpush1.msra.mxu0 %v344
    %554 = vmatprep.subr.mxu0 %v339
    %555 = vmatpush1.msra.mxu0 %v338
    %556 = vmatprep.subr.mxu0 %v333
    %557 = vmatpush1.msra.mxu0 %v332
    %558 = vmatprep.subr.mxu0 %v327
    %559 = vmatpush1.msra.mxu0 %v326
    %560 = vmatprep.subr.mxu0 %v321
    %561 = vmatpush1.msra.mxu0 %v320
    %562 = vmatprep.subr.mxu0 %v315
    %563 = vmatpush1.msra.mxu0 %v314
    %564 = vmatprep.subr.mxu0 %v309
    %565 = vmatpush1.msra.mxu0 %v308
    %566 = vmatprep.subr.mxu0 %v303
    %567 = vmatpush1.msra.mxu0 %v302
    %568 = vmatprep.subr.mxu0 %v297
    %569 = vmatpush1.msra.mxu0 %v296
    %570 = vmatprep.subr.mxu0 %v291
    %571 = vmatpush1.msra.mxu0 %v290
    %572 = vmatprep.subr.mxu0 %v285
    %573 = vmatpush1.msra.mxu0 %v284
    %574 = vmatprep.subr.mxu0 %v279
    %575 = vmatpush1.msra.mxu0 %v278
    %576 = vmatprep.subr.mxu0 0.0
    %577 = vmatpush2.msra.mxu0 0.0
    %578 = vmatprep.subr.mxu0 0.0
    %579 = vmatpush2.msra.mxu0 0.0
    %580 = vmatprep.subr.mxu0 0.0
    %581 = vmatpush2.msra.mxu0 0.0
    %582 = vmatprep.subr.mxu0 0.0
    %583 = vmatpush2.msra.mxu0 0.0
    %584 = vmatprep.subr.mxu0 0.0
    %585 = vmatpush2.msra.mxu0 0.0
    %586 = vmatprep.subr.mxu0 0.0
    %587 = vmatpush2.msra.mxu0 0.0
    %588 = vmatprep.subr.mxu0 0.0
    %589 = vmatpush2.msra.mxu0 0.0
    %590 = vmatprep.subr.mxu0 0.0
    %591 = vmatpush2.msra.mxu0 0.0
    %592 = vmatprep.subr.mxu0 0.0
    %593 = vmatpush2.msra.mxu0 0.0
    %594 = vmatprep.subr.mxu0 0.0
    %595 = vmatpush2.msra.mxu0 0.0
    %596 = vmatprep.subr.mxu0 0.0
    %597 = vmatpush2.msra.mxu0 0.0
    %598 = vmatprep.subr.mxu0 0.0
    %599 = vmatpush2.msra.mxu0 0.0
    %600 = vmatprep.subr.mxu0 0.0
    %601 = vmatpush2.msra.mxu0 0.0
    %602 = vmatprep.subr.mxu0 0.0
    %603 = vmatpush2.msra.mxu0 0.0
    %604 = vmatprep.subr.mxu0 0.0
    %605 = vmatpush2.msra.mxu0 0.0
    %606 = vmatprep.subr.mxu0 0.0
    %607 = vmatpush2.msra.mxu0 0.0
    %608 = vmatprep.mubr.f32.mxu0 0.0
    %609 = vmatmul.mubr.f32.gmra.mxu0 %v273
    %v610 = vpop.f32.mrf.mxu0
    %v611 = vadd.f32 %v391, %v610
    %v612 = vpop.f32.mrf.mxu0
    %v613 = vadd.f32 %v395, %v612
    %614 = vdwg.mxu0
    %v615 = vmul.f32 %v469, %v201
    %v616 = vld [vmem:[#allocation9] sm:$0xff]
    %v617 = vld [vmem:[#allocation9 + $0x8] sm:$0xff]
    %v618 = vld [vmem:[#allocation9 + $0x10] sm:$0xff]
    %v619 = vld [vmem:[#allocation9 + $0x18] sm:$0xff]
    %v620 = vld [vmem:[#allocation9 + $0x20] sm:$0xff]
    %v621 = vld [vmem:[#allocation9 + $0x28] sm:$0xff]
    %v622 = vld [vmem:[#allocation9 + $0x30] sm:$0xff]
    %v623 = vld [vmem:[#allocation9 + $0x38] sm:$0xff]
    %v624 = vld [vmem:[#allocation9 + $0x40] sm:$0xff]
    %v625 = vld [vmem:[#allocation9 + $0x48] sm:$0xff]
    %v626 = vld [vmem:[#allocation9 + $0x50] sm:$0xff]
    %v627 = vld [vmem:[#allocation9 + $0x58] sm:$0xff]
    %v628 = vld [vmem:[#allocation9 + $0x60] sm:$0xff]
    %v629 = vld [vmem:[#allocation9 + $0x68] sm:$0xff]
    %v630 = vld [vmem:[#allocation9 + $0x70] sm:$0xff]
    %v631 = vld [vmem:[#allocation9 + $0x78] sm:$0xff]
    %632 = vmatprep.subr.mxu0 0.0
    %633 = vmatpush1.msra.mxu0 %v631
    %634 = vmatprep.subr.mxu0 0.0
    %635 = vmatpush1.msra.mxu0 %v630
    %636 = vmatprep.subr.mxu0 0.0
    %637 = vmatpush1.msra.mxu0 %v629
    %638 = vmatprep.subr.mxu0 0.0
    %639 = vmatpush1.msra.mxu0 %v628
    %640 = vmatprep.subr.mxu0 0.0
    %641 = vmatpush1.msra.mxu0 %v627
    %642 = vmatprep.subr.mxu0 0.0
    %643 = vmatpush1.msra.mxu0 %v626
    %644 = vmatprep.subr.mxu0 0.0
    %645 = vmatpush1.msra.mxu0 %v625
    %646 = vmatprep.subr.mxu0 0.0
    %647 = vmatpush1.msra.mxu0 %v624
    %648 = vmatprep.subr.mxu0 0.0
    %649 = vmatpush1.msra.mxu0 %v623
    %650 = vmatprep.subr.mxu0 0.0
    %651 = vmatpush1.msra.mxu0 %v622
    %652 = vmatprep.subr.mxu0 0.0
    %653 = vmatpush1.msra.mxu0 %v621
    %654 = vmatprep.subr.mxu0 0.0
    %655 = vmatpush1.msra.mxu0 %v620
    %656 = vmatprep.subr.mxu0 0.0
    %657 = vmatpush1.msra.mxu0 %v619
    %658 = vmatprep.subr.mxu0 0.0
    %659 = vmatpush1.msra.mxu0 %v618
    %660 = vmatprep.subr.mxu0 0.0
    %661 = vmatpush1.msra.mxu0 %v617
    %662 = vmatprep.subr.mxu0 0.0
    %663 = vmatpush1.msra.mxu0 %v616
    %664 = vmatprep.subr.mxu0 0.0
    %665 = vmatpush2.msra.mxu0 0.0
    %666 = vmatprep.subr.mxu0 0.0
    %667 = vmatpush2.msra.mxu0 0.0
    %668 = vmatprep.subr.mxu0 0.0
    %669 = vmatpush2.msra.mxu0 0.0
    %670 = vmatprep.subr.mxu0 0.0
    %671 = vmatpush2.msra.mxu0 0.0
    %672 = vmatprep.subr.mxu0 0.0
    %673 = vmatpush2.msra.mxu0 0.0
    %674 = vmatprep.subr.mxu0 0.0
    %675 = vmatpush2.msra.mxu0 0.0
    %676 = vmatprep.subr.mxu0 0.0
    %677 = vmatpush2.msra.mxu0 0.0
    %678 = vmatprep.subr.mxu0 0.0
    %679 = vmatpush2.msra.mxu0 0.0
    %680 = vmatprep.subr.mxu0 0.0
    %681 = vmatpush2.msra.mxu0 0.0
    %682 = vmatprep.subr.mxu0 0.0
    %683 = vmatpush2.msra.mxu0 0.0
    %684 = vmatprep.subr.mxu0 0.0
    %685 = vmatpush2.msra.mxu0 0.0
    %686 = vmatprep.subr.mxu0 0.0
    %687 = vmatpush2.msra.mxu0 0.0
    %688 = vmatprep.subr.mxu0 0.0
    %689 = vmatpush2.msra.mxu0 0.0
    %690 = vmatprep.subr.mxu0 0.0
    %691 = vmatpush2.msra.mxu0 0.0
    %692 = vmatprep.subr.mxu0 0.0
    %693 = vmatpush2.msra.mxu0 0.0
    %694 = vmatprep.subr.mxu0 0.0
    %695 = vmatpush2.msra.mxu0 0.0
    %696 = vmatprep.mubr.f32.mxu0 0.0
    %697 = vmatmul.mubr.f32.gmra.mxu0 %v615
    %v698 = vpop.f32.mrf.mxu0
    %v699 = vadd.f32 %v270, %v698
    %v700 = vpop.f32.mrf.mxu0
    %701 = vdwg.mxu0
    %v702 = vmul.f32 %v699, %v540
    %v703 = vadd.f32 %v702, %v471
    %v704 = vmax.f32 %v703, 0.0
    %v705 = vmul.f32 %v542, %v704
    %v706 = vld [vmem:[#allocation10] sm:$0xff]
    %v707 = vld [vmem:[#allocation10 + $0x8] sm:$0xff]
    %v708 = vld [vmem:[#allocation10 + $0x10] sm:$0xff]
    %v709 = vld [vmem:[#allocation10 + $0x18] sm:$0xff]
    %v710 = vld [vmem:[#allocation10 + $0x20] sm:$0xff]
    %v711 = vld [vmem:[#allocation10 + $0x28] sm:$0xff]
    %v712 = vld [vmem:[#allocation10 + $0x30] sm:$0xff]
    %v713 = vld [vmem:[#allocation10 + $0x38] sm:$0xff]
    %v714 = vld [vmem:[#allocation10 + $0x40] sm:$0xff]
    %v715 = vld [vmem:[#allocation10 + $0x48] sm:$0xff]
    %v716 = vld [vmem:[#allocation10 + $0x50] sm:$0xff]
    %v717 = vld [vmem:[#allocation10 + $0x58] sm:$0xff]
    %v718 = vld [vmem:[#allocation10 + $0x60] sm:$0xff]
    %v719 = vld [vmem:[#allocation10 + $0x68] sm:$0xff]
    %v720 = vld [vmem:[#allocation10 + $0x70] sm:$0xff]
    %v721 = vld [vmem:[#allocation10 + $0x78] sm:$0xff]
    %722 = vmatprep.subr.mxu0 0.0
    %723 = vmatpush1.msra.mxu0 %v721
    %724 = vmatprep.subr.mxu0 0.0
    %725 = vmatpush1.msra.mxu0 %v720
    %726 = vmatprep.subr.mxu0 0.0
    %727 = vmatpush1.msra.mxu0 %v719
    %728 = vmatprep.subr.mxu0 0.0
    %729 = vmatpush1.msra.mxu0 %v718
    %730 = vmatprep.subr.mxu0 0.0
    %731 = vmatpush1.msra.mxu0 %v717
    %732 = vmatprep.subr.mxu0 0.0
    %733 = vmatpush1.msra.mxu0 %v716
    %734 = vmatprep.subr.mxu0 0.0
    %735 = vmatpush1.msra.mxu0 %v715
    %736 = vmatprep.subr.mxu0 0.0
    %737 = vmatpush1.msra.mxu0 %v714
    %738 = vmatprep.subr.mxu0 0.0
    %739 = vmatpush1.msra.mxu0 %v713
    %740 = vmatprep.subr.mxu0 0.0
    %741 = vmatpush1.msra.mxu0 %v712
    %742 = vmatprep.subr.mxu0 0.0
    %743 = vmatpush1.msra.mxu0 %v711
    %744 = vmatprep.subr.mxu0 0.0
    %745 = vmatpush1.msra.mxu0 %v710
    %746 = vmatprep.subr.mxu0 0.0
    %747 = vmatpush1.msra.mxu0 %v709
    %748 = vmatprep.subr.mxu0 0.0
    %749 = vmatpush1.msra.mxu0 %v708
    %750 = vmatprep.subr.mxu0 0.0
    %751 = vmatpush1.msra.mxu0 %v707
    %752 = vmatprep.subr.mxu0 0.0
    %753 = vmatpush1.msra.mxu0 %v706
    %754 = vmatprep.subr.mxu0 0.0
    %755 = vmatpush2.msra.mxu0 0.0
    %756 = vmatprep.subr.mxu0 0.0
    %757 = vmatpush2.msra.mxu0 0.0
    %758 = vmatprep.subr.mxu0 0.0
    %759 = vmatpush2.msra.mxu0 0.0
    %760 = vmatprep.subr.mxu0 0.0
    %761 = vmatpush2.msra.mxu0 0.0
    %762 = vmatprep.subr.mxu0 0.0
    %763 = vmatpush2.msra.mxu0 0.0
    %764 = vmatprep.subr.mxu0 0.0
    %765 = vmatpush2.msra.mxu0 0.0
    %766 = vmatprep.subr.mxu0 0.0
    %767 = vmatpush2.msra.mxu0 0.0
    %768 = vmatprep.subr.mxu0 0.0
    %769 = vmatpush2.msra.mxu0 0.0
    %770 = vmatprep.subr.mxu0 0.0
    %771 = vmatpush2.msra.mxu0 0.0
    %772 = vmatprep.subr.mxu0 0.0
    %773 = vmatpush2.msra.mxu0 0.0
    %774 = vmatprep.subr.mxu0 0.0
    %775 = vmatpush2.msra.mxu0 0.0
    %776 = vmatprep.subr.mxu0 0.0
    %777 = vmatpush2.msra.mxu0 0.0
    %778 = vmatprep.subr.mxu0 0.0
    %779 = vmatpush2.msra.mxu0 0.0
    %780 = vmatprep.subr.mxu0 0.0
    %781 = vmatpush2.msra.mxu0 0.0
    %782 = vmatprep.subr.mxu0 0.0
    %783 = vmatpush2.msra.mxu0 0.0
    %784 = vmatprep.subr.mxu0 0.0
    %785 = vmatpush2.msra.mxu0 0.0
    %786 = vmatprep.mubr.f32.mxu0 0.0
    %787 = vmatmul.mubr.f32.gmra.mxu0 %v705
    %v788 = vpop.f32.mrf.mxu0
    %v789 = vadd.f32 0.0, %v788
    %v790 = vpop.f32.mrf.mxu0
    %791 = vdwg.mxu0
    %v792 = vmul.f32 %v789, %v611
    %v793 = vadd.f32 %v792, %v613
    %vm794 = vcmask 7168
    %795 = vst.msk [vmem:[%s7] sm:$0xff] %vm794, %v793
    // Predicated region
    $region54: #{tpu_custom_call.1} parent=1 // pred_check
      _
    $region55: #{tpu_custom_call.1} parent=1 // pred_check_branch
      %797 = sbr.rel (0) target = $region57
    $region56: #{tpu_custom_call.1} parent=1 // pred_region
      _
    $region57: #{tpu_custom_call.1} parent=1 // pred_fallthru
      _
    // Predicated region
    $region58: #{tpu_custom_call.1} parent=1 // pred_check
      _
    $region59: #{tpu_custom_call.1} parent=1 // pred_check_branch
      %799 = sbr.rel (0) target = $region61
    $region60: #{tpu_custom_call.1} parent=1 // pred_region
      _
    $region61: #{tpu_custom_call.1} parent=1 // pred_fallthru
      _
    %800 = vsyncpa [#allocation3], 1
    %801 = vsyncpa [#allocation5], 1
    %802 = vsyncpa [#allocation8], 1
    %803 = vsyncpa [#allocation11], 1

</llo_original>
